<compile_context>
chip_gen: v7x
topology: tpu7x:2x2x1
jax: 0.10.0
libtpu: 0.0.40
codegen_flags: <defaults>
</compile_context>

<pallas_src>
import functools

import jax
import jax.numpy as jnp
from jax.experimental import pallas as pl
from jax.experimental.pallas import tpu as pltpu

_LANE = 128
_SUBLANE = 8


def _round_up(n, m):
    return ((n + m - 1) // m) * m


def _lane_alignment():
    """256-aligned K/N on v6e/v7x (2x256x256 MXU); 128 on older gens / unknown."""
    try:
        kind = jax.devices()[0].device_kind.lower()
    except Exception:
        kind = ""
    old = any(t in kind for t in ("v2", "v3", "v4", "v5"))
    return _LANE if old else 256


def _align_dim(d, pref):
    if pref > _LANE and d >= pref:
        return _round_up(d, pref)
    return _round_up(d, _LANE)


def _vmem_cap_bytes():
    try:
        return int(pltpu.get_tpu_info().vmem_capacity_bytes)
    except Exception:
        return 64 << 20          # conservative: v7x per-TC physical VMEM


def _vmem_estimate(tb, d_in_p, d_hid_p, d_out_p, out_bytes):
    """Per-core working-set estimate for one encoder's weights + pipeline buffers."""
    weights = (d_in_p * d_hid_p + d_hid_p * d_out_p) * 2     # bf16, single-buffered
    biases = (d_hid_p + d_out_p) * 4                          # f32, single-buffered
    x_tiles = 2 * tb * d_in_p * 2                             # double-buffered bf16
    o_tiles = 2 * tb * d_out_p * out_bytes                    # double-buffered out
    scratch = tb * (d_hid_p + d_out_p) * 4                    # f32 intermediates
    return weights + biases + x_tiles + o_tiles + scratch


def _pick_batch_tile(bs, max_tile):
    """Pad bs only to a multiple of 8; pick the tile that minimizes tail waste."""
    b8 = _round_up(bs, _SUBLANE)
    max_tile = max(_SUBLANE, (int(max_tile) // _SUBLANE) * _SUBLANE)
    if b8 <= max_tile:
        return b8, b8
    best_tb, best_waste = _SUBLANE, None
    for tb in range(_SUBLANE, max_tile + 1, _SUBLANE):
        waste = _round_up(b8, tb) - b8
        if best_waste is None or waste < best_waste or (
                waste == best_waste and tb > best_tb):
            best_tb, best_waste = tb, waste
    return best_tb, _round_up(b8, best_tb)


def _pad2(a, rows, cols):
    return jnp.pad(a, ((0, rows - a.shape[0]), (0, cols - a.shape[1])))


def _fused_mlp_kernel(x_ref, w1_ref, b1_ref, w2_ref, b2_ref, o_ref, *, normalize):
    # Blocks (leading grid dims of size 1, squeezed via [0]):
    #   x : [1, TB, D_in]   (bf16)     w1: [1, D_in, D_hid]  (bf16)
    #   b1: [1, 1,  D_hid]  (f32)      w2: [1, D_hid, D_out] (bf16)
    #   b2: [1, 1,  D_out]  (f32)  ->  o : [1, TB, D_out]    (out dtype, lane-dense)
    h = jnp.dot(x_ref[0], w1_ref[0], preferred_element_type=jnp.float32)
    h = jnp.maximum(h + b1_ref[0], 0.0)                 # bias + ReLU stay in f32
    o = jnp.dot(h.astype(jnp.bfloat16), w2_ref[0],
                preferred_element_type=jnp.float32)
    o = o + b2_ref[0]
    if normalize:
        # Fused F.normalize(p=2, dim=1): padded output columns are exact zeros,
        # so the row norm over the padded block equals the true row norm.
        sq = jnp.sum(o * o, axis=-1, keepdims=True)
        o = o * jax.lax.rsqrt(jnp.maximum(sq, 1e-24))   # EUP rsqrt; ~torch eps 1e-12
    o_ref[0] = o.astype(o_ref.dtype)


def fused_dual_mlp(x2, w1_2, b1_2, w2_2, b2_2, *, batch_tile,
                   normalize=False, out_dtype=jnp.bfloat16):
    """Both encoders in one pallas_call.

    x2:   [2, B_pad, D_in]  bf16   w1_2: [2, D_in, D_hid]  bf16
    b1_2: [2, 1, D_hid] f32        w2_2: [2, D_hid, D_out] bf16
    b2_2: [2, 1, D_out] f32   ->   [2, B_pad, D_out] out_dtype
    """
    n_enc, b_pad, d_in = x2.shape
    d_hid = w1_2.shape[2]
    d_out = w2_2.shape[2]
    assert b_pad % batch_tile == 0
    grid = (n_enc, b_pad // batch_tile)

    out_bytes = jnp.dtype(out_dtype).itemsize
    est = _vmem_estimate(batch_tile, d_in, d_hid, d_out, out_bytes)
    cap = _vmem_cap_bytes()
    vmem_limit = int(min(max(1.5 * est + (2 << 20), 32 << 20), 0.95 * cap))

    # Weights / biases are batch-invariant: single-buffer them (double-buffering
    # would only double their VMEM footprint for zero overlap benefit).
    resident = dict(pipeline_mode=pl.Buffered(1))

    return pl.pallas_call(
        functools.partial(_fused_mlp_kernel, normalize=normalize),
        out_shape=jax.ShapeDtypeStruct((n_enc, b_pad, d_out), out_dtype),
        grid_spec=pltpu.PrefetchScalarGridSpec(
            num_scalar_prefetch=0,
            grid=grid,
            in_specs=[
                # input: tiled over batch (auto double-buffered)
                pl.BlockSpec((1, batch_tile, d_in), lambda e, b: (e, b, 0)),
                # weights / biases: grid-invariant over batch -> resident
                pl.BlockSpec((1, d_in, d_hid), lambda e, b: (e, 0, 0), **resident),
                pl.BlockSpec((1, 1, d_hid), lambda e, b: (e, 0, 0), **resident),
                pl.BlockSpec((1, d_hid, d_out), lambda e, b: (e, 0, 0), **resident),
                pl.BlockSpec((1, 1, d_out), lambda e, b: (e, 0, 0), **resident),
            ],
            out_specs=pl.BlockSpec((1, batch_tile, d_out),
                                   lambda e, b: (e, b, 0)),
        ),
        compiler_params=pltpu.CompilerParams(
            # encoder axis and batch axis are independent -> shardable across TCs
            dimension_semantics=("parallel", "parallel"),
            vmem_limit_bytes=vmem_limit),
    )(x2, w1_2, b1_2, w2_2, b2_2)


def init_encoder_params(key, input_size, output_size):
    """nn.Linear-shaped params (stored transposed: [in, out]); biases as [1, out]."""
    hidden = input_size // 2
    k1, k2, k3, k4 = jax.random.split(key, 4)
    bound1 = 1.0 / (input_size ** 0.5)
    bound2 = 1.0 / (hidden ** 0.5)
    w1 = jax.random.uniform(k1, (input_size, hidden), jnp.float32, -bound1, bound1)
    b1 = jax.random.uniform(k2, (1, hidden), jnp.float32, -bound1, bound1)
    w2 = jax.random.uniform(k3, (hidden, output_size), jnp.float32, -bound2, bound2)
    b2 = jax.random.uniform(k4, (1, output_size), jnp.float32, -bound2, bound2)
    return w1, b1, w2, b2


def prepare_dpr_params(source_params, target_params):
    """One-time parameter prep: pad to lane-aligned dims, cast to bf16/f32, stack.

    Zero padding is mathematically neutral: zero input cols x zero weight rows,
    zero-bias padded hidden units die in ReLU, padded output cols stay exactly 0.
    """
    w1s, _, w2s, _ = source_params
    d_in, d_hid = w1s.shape
    d_out = w2s.shape[1]
    pref = _lane_alignment()
    d_in_p = _align_dim(d_in, pref)
    d_hid_p = _align_dim(d_hid, pref)
    d_out_p = _align_dim(d_out, pref)

    def pad_one(p):
        w1, b1, w2, b2 = p
        return (_pad2(w1, d_in_p, d_hid_p).astype(jnp.bfloat16),
                _pad2(b1, 1, d_hid_p).astype(jnp.float32),
                _pad2(w2, d_hid_p, d_out_p).astype(jnp.bfloat16),
                _pad2(b2, 1, d_out_p).astype(jnp.float32))

    sp, tp = pad_one(source_params), pad_one(target_params)
    w1_2, b1_2, w2_2, b2_2 = (jnp.stack([a, b]) for a, b in zip(sp, tp))
    return {
        "w1": w1_2, "b1": b1_2, "w2": w2_2, "b2": b2_2,
        "dims": (d_in, d_hid, d_out),
        "padded_dims": (d_in_p, d_hid_p, d_out_p),
    }


def source_target_dpr_forward(x, prepared, duplicate=True, batch_tile=512,
                              out_dtype=jnp.bfloat16, materialize_duplicate=True):
    """
    :param x: dict with 'anchor' and 'target', each [bs, input_size]
    :param prepared: output of prepare_dpr_params (one-time param prep)
    :return: (anchor, target) — if duplicate: anchor [bs, out], target [bs, bs, out]
             with target[i, j] = target_encoder(x['target'])[j];
             else: L2-normalized [bs, out] each (fused into the kernel epilogue).
    """
    anchor_in = x["anchor"]
    target_in = x["target"]
    bs, d_in = anchor_in.shape
    d_in_chk, _, d_out = prepared["dims"]
    assert d_in == d_in_chk, "input size does not match prepared params"
    d_in_p, d_hid_p, d_out_p = prepared["padded_dims"]

    # Shrink the requested batch tile until the working set fits scoped VMEM.
    cap = _vmem_cap_bytes()
    out_bytes = jnp.dtype(out_dtype).itemsize
    bt = max(_SUBLANE, (int(batch_tile) // _SUBLANE) * _SUBLANE)
    while bt > _SUBLANE and _vmem_estimate(bt, d_in_p, d_hid_p, d_out_p,
                                           out_bytes) > int(0.8 * cap):
        bt = max(_SUBLANE, (bt // 2 // _SUBLANE) * _SUBLANE)

    tb, b_p = _pick_batch_tile(bs, bt)

    # Per-call work on activations only (params were prepared once).
    x2 = jnp.stack([_pad2(anchor_in, b_p, d_in_p),
                    _pad2(target_in, b_p, d_in_p)]).astype(jnp.bfloat16)

    out = fused_dual_mlp(x2, prepared["w1"], prepared["b1"],
                         prepared["w2"], prepared["b2"],
                         batch_tile=tb, normalize=not duplicate,
                         out_dtype=out_dtype)
    anchor = out[0, :bs, :d_out]
    target = out[1, :bs, :d_out]

    if duplicate:
        if materialize_duplicate:
            # torch: cat([t.unsqueeze(1)]*bs, dim=1).transpose(0,1) -> z[i, j] = t[j]
            # TODO(synk): for large bs keep this lazy / fuse into the downstream
            # similarity instead of materializing the O(bs^2) broadcast.
            target = jnp.broadcast_to(target[None, :, :], (bs, bs, d_out))
    # duplicate=False: L2 normalization already applied inside the kernel.
    return anchor, target


if __name__ == "__main__":
    key = jax.random.PRNGKey(0)
    k_src, k_tgt, k_a, k_t = jax.random.split(key, 4)

    bs, input_size, output_size = 8, 32, 16

    source_params = init_encoder_params(k_src, input_size, output_size)
    target_params = init_encoder_params(k_tgt, input_size, output_size)
    prepared = prepare_dpr_params(source_params, target_params)   # one-time prep

    x = {
        "anchor": jax.random.normal(k_a, (bs, input_size), jnp.float32),
        "target": jax.random.normal(k_t, (bs, input_size), jnp.float32),
    }

    anchor, target = source_target_dpr_forward(x, prepared, duplicate=True)
    jax.block_until_ready((anchor, target))

    # Reference (plain JAX, same bf16-operand / f32-accumulate math).
    def ref_mlp(xv, w1, b1, w2, b2):
        h = jnp.dot(xv.astype(jnp.bfloat16), w1.astype(jnp.bfloat16),
                    preferred_element_type=jnp.float32)
        h = jnp.maximum(h + b1, 0.0)
        o = jnp.dot(h.astype(jnp.bfloat16), w2.astype(jnp.bfloat16),
                    preferred_element_type=jnp.float32)
        return o + b2

    ref_anchor = ref_mlp(x["anchor"], *source_params)
    ref_target = ref_mlp(x["target"], *target_params)

    assert anchor.shape == (bs, output_size)
    assert target.shape == (bs, bs, output_size)
    assert jnp.allclose(anchor.astype(jnp.float32), ref_anchor,
                        atol=3e-2, rtol=3e-2)
    assert jnp.allclose(target.astype(jnp.float32),
                        jnp.broadcast_to(ref_target[None], (bs, bs, output_size)),
                        atol=3e-2, rtol=3e-2)

    # duplicate=False path: L2 normalization fused into the kernel epilogue.
    a_n, t_n = source_target_dpr_forward(x, prepared, duplicate=False)
    jax.block_until_ready((a_n, t_n))
    ref_a_n = ref_anchor / jnp.linalg.norm(ref_anchor, axis=1, keepdims=True)
    ref_t_n = ref_target / jnp.linalg.norm(ref_target, axis=1, keepdims=True)
    assert a_n.shape == (bs, output_size) and t_n.shape == (bs, output_size)
    assert jnp.allclose(a_n.astype(jnp.float32), ref_a_n, atol=3e-2, rtol=3e-2)
    assert jnp.allclose(t_n.astype(jnp.float32), ref_t_n, atol=3e-2, rtol=3e-2)

    # Batch-tail path: bs not a multiple of the requested tile; tile shrinks to
    # avoid large padded-row waste instead of rounding the batch up.
    bs2 = 20
    x_tail = {
        "anchor": jax.random.normal(k_a, (bs2, input_size), jnp.float32),
        "target": jax.random.normal(k_t, (bs2, input_size), jnp.float32),
    }
    a2, t2 = source_target_dpr_forward(x_tail, prepared, duplicate=True,
                                       batch_tile=16)
    jax.block_until_ready((a2, t2))
    ref_a2 = ref_mlp(x_tail["anchor"], *source_params)
    assert a2.shape == (bs2, output_size) and t2.shape == (bs2, bs2, output_size)
    assert jnp.allclose(a2.astype(jnp.float32), ref_a2, atol=3e-2, rtol=3e-2)

    print("KERNEL_OK")
</pallas_src>

<mosaic_0001>
module attributes {stable_mosaic.version = 11 : i64} {
  func.func @_fused_mlp_kernel(%arg0: i32, %arg1: i32, %arg2: memref<1x8x128xbf16, #tpu.memory_space<vmem>>, %arg3: memref<1x128x128xbf16, #tpu.memory_space<vmem>>, %arg4: memref<1x1x128xf32, #tpu.memory_space<vmem>>, %arg5: memref<1x128x128xbf16, #tpu.memory_space<vmem>>, %arg6: memref<1x1x128xf32, #tpu.memory_space<vmem>>, %arg7: memref<1x8x128xbf16, #tpu.memory_space<vmem>>) attributes {dimension_semantics = [#tpu.dimension_semantics<parallel>, #tpu.dimension_semantics<parallel>], iteration_bounds = array<i64: 2, 1>, scalar_prefetch = 0 : i64, scratch_operands = 0 : i64, tpu.core_type = #tpu.core_type<tc>, window_params = [{transform_indices = @transform_0, window_bounds = array<i64: 1, 8, 128>}, {pipeline_mode = #tpu.pipeline_mode<synchronous>, transform_indices = @transform_1, window_bounds = array<i64: 1, 128, 128>}, {pipeline_mode = #tpu.pipeline_mode<synchronous>, transform_indices = @transform_2, window_bounds = array<i64: 1, 1, 128>}, {pipeline_mode = #tpu.pipeline_mode<synchronous>, transform_indices = @transform_3, window_bounds = array<i64: 1, 128, 128>}, {pipeline_mode = #tpu.pipeline_mode<synchronous>, transform_indices = @transform_4, window_bounds = array<i64: 1, 1, 128>}, {transform_indices = @transform_5, window_bounds = array<i64: 1, 8, 128>}]} {
    %c0 = arith.constant 0 : index
    %c0_0 = arith.constant 0 : index
    %c0_1 = arith.constant 0 : index
    %0 = vector.load %arg2[%c0, %c0_0, %c0_1] : memref<1x8x128xbf16, #tpu.memory_space<vmem>>, vector<1x8x128xbf16>
    %1 = vector.shape_cast %0 : vector<1x8x128xbf16> to vector<8x128xbf16>
    %c0_2 = arith.constant 0 : index
    %c0_3 = arith.constant 0 : index
    %c0_4 = arith.constant 0 : index
    %2 = vector.load %arg3[%c0_2, %c0_3, %c0_4] : memref<1x128x128xbf16, #tpu.memory_space<vmem>>, vector<1x128x128xbf16>
    %3 = vector.shape_cast %2 : vector<1x128x128xbf16> to vector<128x128xbf16>
    %cst = arith.constant dense<0.000000e+00> : vector<8x128xf32>
    %4 = tpu.matmul %1, %3, %cst {dimension_numbers = #tpu.dot_dimension_numbers<[1], [0], [0], [1], [0, 0, 1, 1], [], []>} : vector<8x128xbf16>, vector<128x128xbf16>, vector<8x128xf32> -> vector<8x128xf32>
    %c0_5 = arith.constant 0 : index
    %c0_6 = arith.constant 0 : index
    %c0_7 = arith.constant 0 : index
    %5 = vector.load %arg4[%c0_5, %c0_6, %c0_7] : memref<1x1x128xf32, #tpu.memory_space<vmem>>, vector<1x1x128xf32>
    %6 = vector.shape_cast %5 : vector<1x1x128xf32> to vector<1x128xf32>
    %7 = vector.broadcast %6 : vector<1x128xf32> to vector<8x128xf32>
    %8 = arith.addf %4, %7 : vector<8x128xf32>
    %cst_8 = arith.constant 0.000000e+00 : f32
    %9 = vector.broadcast %cst_8 : f32 to vector<8x128xf32>
    %10 = arith.maximumf %8, %9 : vector<8x128xf32>
    %11 = arith.truncf %10 : vector<8x128xf32> to vector<8x128xbf16>
    %c0_9 = arith.constant 0 : index
    %c0_10 = arith.constant 0 : index
    %c0_11 = arith.constant 0 : index
    %12 = vector.load %arg5[%c0_9, %c0_10, %c0_11] : memref<1x128x128xbf16, #tpu.memory_space<vmem>>, vector<1x128x128xbf16>
    %13 = vector.shape_cast %12 : vector<1x128x128xbf16> to vector<128x128xbf16>
    %cst_12 = arith.constant dense<0.000000e+00> : vector<8x128xf32>
    %14 = tpu.matmul %11, %13, %cst_12 {dimension_numbers = #tpu.dot_dimension_numbers<[1], [0], [0], [1], [0, 0, 1, 1], [], []>} : vector<8x128xbf16>, vector<128x128xbf16>, vector<8x128xf32> -> vector<8x128xf32>
    %c0_13 = arith.constant 0 : index
    %c0_14 = arith.constant 0 : index
    %c0_15 = arith.constant 0 : index
    %15 = vector.load %arg6[%c0_13, %c0_14, %c0_15] : memref<1x1x128xf32, #tpu.memory_space<vmem>>, vector<1x1x128xf32>
    %16 = vector.shape_cast %15 : vector<1x1x128xf32> to vector<1x128xf32>
    %17 = vector.broadcast %16 : vector<1x128xf32> to vector<8x128xf32>
    %18 = arith.addf %14, %17 : vector<8x128xf32>
    %19 = arith.truncf %18 : vector<8x128xf32> to vector<8x128xbf16>
    %c0_16 = arith.constant 0 : index
    %c0_17 = arith.constant 0 : index
    %c0_18 = arith.constant 0 : index
    %20 = vector.load %arg7[%c0_16, %c0_17, %c0_18] : memref<1x8x128xbf16, #tpu.memory_space<vmem>>, vector<1x8x128xbf16>
    %21 = vector.shape_cast %20 : vector<1x8x128xbf16> to vector<8x128xbf16>
    %22 = vector.shape_cast %19 : vector<8x128xbf16> to vector<1x8x128xbf16>
    tpu.vector_store %arg7[%c0_16, %c0_17, %c0_18], %22 {strides = array<i32>} : memref<1x8x128xbf16, #tpu.memory_space<vmem>>, vector<1x8x128xbf16>,
    return
  }
  func.func @transform_0(%arg0: i32, %arg1: i32) -> (i32, i32, i32) {
    %c0_i32 = arith.constant 0 : i32
    %c0_i32_0 = arith.constant 0 : i32
    return %arg0, %arg1, %c0_i32 : i32, i32, i32
  }
  func.func @transform_1(%arg0: i32, %arg1: i32) -> (i32, i32, i32) {
    %c0_i32 = arith.constant 0 : i32
    %c0_i32_0 = arith.constant 0 : i32
    %c0_i32_1 = arith.constant 0 : i32
    return %arg0, %c0_i32, %c0_i32_0 : i32, i32, i32
  }
  func.func @transform_2(%arg0: i32, %arg1: i32) -> (i32, i32, i32) {
    %c0_i32 = arith.constant 0 : i32
    %c0_i32_0 = arith.constant 0 : i32
    %c0_i32_1 = arith.constant 0 : i32
    return %arg0, %c0_i32, %c0_i32_0 : i32, i32, i32
  }
  func.func @transform_3(%arg0: i32, %arg1: i32) -> (i32, i32, i32) {
    %c0_i32 = arith.constant 0 : i32
    %c0_i32_0 = arith.constant 0 : i32
    %c0_i32_1 = arith.constant 0 : i32
    return %arg0, %c0_i32, %c0_i32_0 : i32, i32, i32
  }
  func.func @transform_4(%arg0: i32, %arg1: i32) -> (i32, i32, i32) {
    %c0_i32 = arith.constant 0 : i32
    %c0_i32_0 = arith.constant 0 : i32
    %c0_i32_1 = arith.constant 0 : i32
    return %arg0, %c0_i32, %c0_i32_0 : i32, i32, i32
  }
  func.func @transform_5(%arg0: i32, %arg1: i32) -> (i32, i32, i32) {
    %c0_i32 = arith.constant 0 : i32
    %c0_i32_0 = arith.constant 0 : i32
    return %arg0, %arg1, %c0_i32 : i32, i32, i32
  }
}

</mosaic_0001>

<llo_original>
// kernel: tpu_custom_call.1
$region0: #{tpu_custom_call.1}
  #allocation0 [shape = 'u32[]', space=smem, size = 0x4, offset = 0x4, fixed_abs, tag = 'smem constant byte address 0x4 - core index']
  #allocation1 [shape = 'u32[144,128]{1,0:T(1,128)}', space=vmem, size = 0x12000, scoped, tag = 'internal scratch']
  %s0 = inlined_call_operand.hbm [shape: bf16[2,8,128], index: 0, kind: input, shape index: {}]
  %s1 = inlined_call_operand.hbm [shape: bf16[2,128,128], index: 1, kind: input, shape index: {}]
  %s2 = inlined_call_operand.vmem [shape: f32[2,1,128], index: 2, kind: input, shape index: {}]
  %s3 = inlined_call_operand.hbm [shape: bf16[2,128,128], index: 3, kind: input, shape index: {}]
  %s4 = inlined_call_operand.vmem [shape: f32[2,1,128], index: 4, kind: input, shape index: {}]
  %s5 = inlined_call_operand.hbm [shape: bf16[2,8,128], index: 5, kind: output, shape index: {}]
  %s6 = sld [smem:[#allocation0]]
  $region65: #{tpu_custom_call.1} parent=0
    _
  %s8 = ssub.s32 1, %s6
  %s9 = scalar_select 0, %s8, %s6
  $region1: #{tpu_custom_call.1} parent=0
    #allocation2 [shape = 'u8[4096]{0}', space=vmem, size = 0x1000, scoped, tag = 'input window, operand 0']
    #allocation3 [shape = 's32[2]{0}', space=sflag, size = 0x8, scoped, tag = 'scoped memory for tpu_custom_call.1']
    #allocation4 [shape = 's32[2]{0}', space=sflag, size = 0x8, scoped, tag = 'scoped memory for tpu_custom_call.1']
    #allocation5 [shape = 'u8[32768]{0}', space=vmem, size = 0x8000, scoped, tag = 'input window, operand 1, single buffered']
    #allocation6 [shape = 's32[1]{0}', space=sflag, size = 0x4, scoped, tag = 'scoped memory for tpu_custom_call.1']
    #allocation7 [shape = 'u8[32768]{0}', space=vmem, size = 0x8000, scoped, tag = 'input window, operand 3, single buffered']
    #allocation8 [shape = 'u8[4096]{0}', space=vmem, size = 0x1000, scoped, tag = 'output window, operand 0']
    %10 = vsyncpa [#allocation3], 0
    %s11 = scalar_lea.sflag [#allocation3], 1
    %12 = vsyncpa %s11, 0
    %13 = vsyncpa [#allocation6], 0
    %14 = vsyncpa [#allocation4], 0
    %s15 = scalar_lea.sflag [#allocation4], 1
    %16 = vsyncpa %s15, 0
    loop: start=0, step=1, limit=4
    $region2: #{tpu_custom_call.1} parent=1 // loop_pre_header
      _
    $region3: #{tpu_custom_call.1} parent=1 // loop_header
      %s18 = sphi 0, %s22
      %p19 = scmp.ge.s32.totalorder %s18, 4
      %s25 = sphi 0, %s37
      %s26 = sphi 0, %s33
      %s27 = sphi 0, %s25
      %s28 = sphi 0, %s26
      %s29 = sphi 0, %s27
      %s30 = sphi 0, %s28
      %s42 = sphi 0, %s44
      %s45 = sphi 0, %s42
      %s46 = sphi 0, %s45
      %s62 = sphi 0, %s46
      %s68 = sphi 0, %s70
      %s71 = sphi 0, %s68
      %s72 = sphi 0, %s71
      %s88 = sphi 0, %s72
      %s94 = sphi 0, %s96
      %s97 = sphi 0, %s94
      %s98 = sphi 0, %s97
      %s114 = sphi 0, %s98
      %s120 = sphi 0, %s122
      %s123 = sphi 0, %s120
      %s124 = sphi 0, %s123
      %s140 = sphi 0, %s124
      %s146 = sphi 0, %s148
      %s149 = sphi 0, %s146
      %s150 = sphi 0, %s149
      %s166 = sphi 0, %s150
      %s174 = sphi 0, %s176
      %s177 = sphi 0, %s174
      %s178 = sphi 0, %s177
      %s194 = sphi 0, %s178
    $region4: #{tpu_custom_call.1} parent=1 // loop_header_branch
      %21 = sbr.rel (%p19) target = $region8
    $region5: #{tpu_custom_call.1} parent=1 // loop_body
      %s23 = ssub.s32 %s18, 1
      %s24 = ssub.s32 %s18, 2
      %s31 = sadd.s32 1, %s26
      %p32 = scmp.ge.s32.totalorder %s31, 1
      %s33 = scalar_select %p32, 0, %s31
      %s34 = sadd.s32 1, %s25
      %s35 = scalar_select %p32, %s34, %s25
      %p36 = scmp.ge.s32.totalorder %s35, 2
      %s37 = scalar_select %p36, 0, %s35
      %s38 = ssub.s32 %s25, %s37
      %s39 = ssub.s32 %s26, %s33
      %s40 = sor.u32 %s38, %s39
      %p41 = scmp.eq.s32.totalorder %s40, 0
      %s43 = sadd.s32 %s42, 1
      %s44 = scalar_select %p41, %s42, %s43
      %p47 = pneg %p41
      %p48 = scmp.eq.s32.totalorder %s18, 1
      %p49 = por %p47, %p48
      %p50 = scmp.ne.s32.totalorder %s42, %s45
      %p51 = scmp.eq.s32.totalorder %s18, 0
      %p52 = por %p50, %p51
      %p53 = scmp.ne.s32.totalorder %s42, %s45
      %p54 = scmp.eq.s32.totalorder %s23, 1
      %p55 = por %p53, %p54
      %p56 = scmp.ne.s32.totalorder %s45, %s46
      %p57 = scmp.eq.s32.totalorder %s23, 0
      %p58 = por %p56, %p57
      %p59 = scmp.ne.s32.totalorder %s45, %s46
      %p60 = scmp.eq.s32.totalorder %s24, 1
      %p61 = por %p59, %p60
      %p63 = scmp.ne.s32.totalorder %s46, %s62
      %p64 = scmp.eq.s32.totalorder %s24, 0
      %p65 = por %p63, %p64
      %s66 = ssub.s32 %s25, %s37
      %p67 = scmp.eq.s32.totalorder %s66, 0
      %s69 = sadd.s32 %s68, 1
      %s70 = scalar_select %p67, %s68, %s69
      %p73 = pneg %p67
      %p74 = scmp.eq.s32.totalorder %s18, 1
      %p75 = por %p73, %p74
      %p76 = scmp.ne.s32.totalorder %s68, %s71
      %p77 = scmp.eq.s32.totalorder %s18, 0
      %p78 = por %p76, %p77
      %p79 = scmp.ne.s32.totalorder %s68, %s71
      %p80 = scmp.eq.s32.totalorder %s23, 1
      %p81 = por %p79, %p80
      %p82 = scmp.ne.s32.totalorder %s71, %s72
      %p83 = scmp.eq.s32.totalorder %s23, 0
      %p84 = por %p82, %p83
      %p85 = scmp.ne.s32.totalorder %s71, %s72
      %p86 = scmp.eq.s32.totalorder %s24, 1
      %p87 = por %p85, %p86
      %p89 = scmp.ne.s32.totalorder %s72, %s88
      %p90 = scmp.eq.s32.totalorder %s24, 0
      %p91 = por %p89, %p90
      %s92 = ssub.s32 %s25, %s37
      %p93 = scmp.eq.s32.totalorder %s92, 0
      %s95 = sadd.s32 %s94, 1
      %s96 = scalar_select %p93, %s94, %s95
      %p99 = pneg %p93
      %p100 = scmp.eq.s32.totalorder %s18, 1
      %p101 = por %p99, %p100
      %p102 = scmp.ne.s32.totalorder %s94, %s97
      %p103 = scmp.eq.s32.totalorder %s18, 0
      %p104 = por %p102, %p103
      %p105 = scmp.ne.s32.totalorder %s94, %s97
      %p106 = scmp.eq.s32.totalorder %s23, 1
      %p107 = por %p105, %p106
      %p108 = scmp.ne.s32.totalorder %s97, %s98
      %p109 = scmp.eq.s32.totalorder %s23, 0
      %p110 = por %p108, %p109
      %p111 = scmp.ne.s32.totalorder %s97, %s98
      %p112 = scmp.eq.s32.totalorder %s24, 1
      %p113 = por %p111, %p112
      %p115 = scmp.ne.s32.totalorder %s98, %s114
      %p116 = scmp.eq.s32.totalorder %s24, 0
      %p117 = por %p115, %p116
      %s118 = ssub.s32 %s25, %s37
      %p119 = scmp.eq.s32.totalorder %s118, 0
      %s121 = sadd.s32 %s120, 1
      %s122 = scalar_select %p119, %s120, %s121
      %p125 = pneg %p119
      %p126 = scmp.eq.s32.totalorder %s18, 1
      %p127 = por %p125, %p126
      %p128 = scmp.ne.s32.totalorder %s120, %s123
      %p129 = scmp.eq.s32.totalorder %s18, 0
      %p130 = por %p128, %p129
      %p131 = scmp.ne.s32.totalorder %s120, %s123
      %p132 = scmp.eq.s32.totalorder %s23, 1
      %p133 = por %p131, %p132
      %p134 = scmp.ne.s32.totalorder %s123, %s124
      %p135 = scmp.eq.s32.totalorder %s23, 0
      %p136 = por %p134, %p135
      %p137 = scmp.ne.s32.totalorder %s123, %s124
      %p138 = scmp.eq.s32.totalorder %s24, 1
      %p139 = por %p137, %p138
      %p141 = scmp.ne.s32.totalorder %s124, %s140
      %p142 = scmp.eq.s32.totalorder %s24, 0
      %p143 = por %p141, %p142
      %s144 = ssub.s32 %s25, %s37
      %p145 = scmp.eq.s32.totalorder %s144, 0
      %s147 = sadd.s32 %s146, 1
      %s148 = scalar_select %p145, %s146, %s147
      %p151 = pneg %p145
      %p152 = scmp.eq.s32.totalorder %s18, 1
      %p153 = por %p151, %p152
      %p154 = scmp.ne.s32.totalorder %s146, %s149
      %p155 = scmp.eq.s32.totalorder %s18, 0
      %p156 = por %p154, %p155
      %p157 = scmp.ne.s32.totalorder %s146, %s149
      %p158 = scmp.eq.s32.totalorder %s23, 1
      %p159 = por %p157, %p158
      %p160 = scmp.ne.s32.totalorder %s149, %s150
      %p161 = scmp.eq.s32.totalorder %s23, 0
      %p162 = por %p160, %p161
      %p163 = scmp.ne.s32.totalorder %s149, %s150
      %p164 = scmp.eq.s32.totalorder %s24, 1
      %p165 = por %p163, %p164
      %p167 = scmp.ne.s32.totalorder %s150, %s166
      %p168 = scmp.eq.s32.totalorder %s24, 0
      %p169 = por %p167, %p168
      %s170 = ssub.s32 %s25, %s37
      %s171 = ssub.s32 %s26, %s33
      %s172 = sor.u32 %s170, %s171
      %p173 = scmp.eq.s32.totalorder %s172, 0
      %s175 = sadd.s32 %s174, 1
      %s176 = scalar_select %p173, %s174, %s175
      %p179 = pneg %p173
      %p180 = scmp.eq.s32.totalorder %s18, 1
      %p181 = por %p179, %p180
      %p182 = scmp.ne.s32.totalorder %s174, %s177
      %p183 = scmp.eq.s32.totalorder %s18, 0
      %p184 = por %p182, %p183
      %p185 = scmp.ne.s32.totalorder %s174, %s177
      %p186 = scmp.eq.s32.totalorder %s23, 1
      %p187 = por %p185, %p186
      %p188 = scmp.ne.s32.totalorder %s177, %s178
      %p189 = scmp.eq.s32.totalorder %s23, 0
      %p190 = por %p188, %p189
      %p191 = scmp.ne.s32.totalorder %s177, %s178
      %p192 = scmp.eq.s32.totalorder %s24, 1
      %p193 = por %p191, %p192
      %p195 = scmp.ne.s32.totalorder %s178, %s194
      %p196 = scmp.eq.s32.totalorder %s24, 0
      %p197 = por %p195, %p196
      %p198 = scmp.le.s32.totalorder 1, %s18
      %p199 = scmp.lt.s32.totalorder %s18, 3
      %p200 = pnand %p198, %p199
      %p201 = pneg %p200
      // Predicated region
      $region9: #{tpu_custom_call.1} parent=5 // pred_check
        _
      $region10: #{tpu_custom_call.1} parent=5 // pred_check_branch
        %203 = sbr.rel (%p200) target = $region12
      $region11: #{tpu_custom_call.1} parent=5 // pred_region
        %s204 = ssub.s32 %s18, 1
        // Predicated region
        $region13: #{tpu_custom_call.1} parent=11 // pred_check
          %p205 = pneg %p84
        $region14: #{tpu_custom_call.1} parent=11 // pred_check_branch
          %207 = sbr.rel (%p205) target = $region16
        $region15: #{tpu_custom_call.1} parent=11 // pred_region
          %s209 = ssub.s32 1024, 1024
          %210 = vsyncadd [#allocation6], %s209
          %s211 = smul.addr %s27, 16
          %s212 = smul.addr %s211, 64
          %s213 = scalar_lea.hbm %s1, %s212
          %s214 = sshll.u32 [#allocation5], 4
          %s215 = int_to_ptr.vmem [resolvable:$true] %s214
          %220 = dma.hbm_to_vmem [thread:$0]  %s213, 1024, %s215, [#allocation6], 64, 64, 4
        $region16: #{tpu_custom_call.1} parent=11 // pred_fallthru
          _
        // Predicated region
        $region17: #{tpu_custom_call.1} parent=11 // pred_check
          %p221 = pneg %p110
        $region18: #{tpu_custom_call.1} parent=11 // pred_check_branch
          %223 = sbr.rel (%p221) target = $region20
        $region19: #{tpu_custom_call.1} parent=11 // pred_region
          %p224 = scmp.lt.s32.totalorder %s27, 1
          %s225 = scalar_select %p224, %s27, 1
          %s226 = scalar_lea.vmem %s2, %s225
        $region20: #{tpu_custom_call.1} parent=11 // pred_fallthru
          _
        // Predicated region
        $region21: #{tpu_custom_call.1} parent=11 // pred_check
          %p227 = pneg %p136
        $region22: #{tpu_custom_call.1} parent=11 // pred_check_branch
          %229 = sbr.rel (%p227) target = $region24
        $region23: #{tpu_custom_call.1} parent=11 // pred_region
          %s231 = ssub.s32 1024, 1024
          %232 = vsyncadd [#allocation6], %s231
          %s233 = smul.addr %s27, 16
          %s234 = smul.addr %s233, 64
          %s235 = scalar_lea.hbm %s3, %s234
          %s236 = sshll.u32 [#allocation7], 4
          %s237 = int_to_ptr.vmem [resolvable:$true] %s236
          %242 = dma.hbm_to_vmem [thread:$0]  %s235, 1024, %s237, [#allocation6], 64, 64, 4
        $region24: #{tpu_custom_call.1} parent=11 // pred_fallthru
          _
        // Predicated region
        $region25: #{tpu_custom_call.1} parent=11 // pred_check
          %p243 = pneg %p162
        $region26: #{tpu_custom_call.1} parent=11 // pred_check_branch
          %245 = sbr.rel (%p243) target = $region28
        $region27: #{tpu_custom_call.1} parent=11 // pred_region
          %p246 = scmp.lt.s32.totalorder %s27, 1
          %s247 = scalar_select %p246, %s27, 1
          %s248 = scalar_lea.vmem %s4, %s247
        $region28: #{tpu_custom_call.1} parent=11 // pred_fallthru
          _
      $region12: #{tpu_custom_call.1} parent=5 // pred_fallthru
        _
      %p249 = scmp.lt.s32.totalorder %s18, 2
      // Predicated region
      $region29: #{tpu_custom_call.1} parent=5 // pred_check
        %p250 = pneg %p249
      $region30: #{tpu_custom_call.1} parent=5 // pred_check_branch
        %252 = sbr.rel (%p250) target = $region32
      $region31: #{tpu_custom_call.1} parent=5 // pred_region
        // Predicated region
        $region33: #{tpu_custom_call.1} parent=31 // pred_check
          %p253 = pneg %p52
        $region34: #{tpu_custom_call.1} parent=31 // pred_check_branch
          %255 = sbr.rel (%p253) target = $region36
        $region35: #{tpu_custom_call.1} parent=31 // pred_region
          %s256 = sand.u32 %s42, 1
          %s257 = scalar_lea.sflag [#allocation3], %s256
          %s258 = sand.u32 %s42, 1
          %s259 = smul.addr %s258, 4
          %s260 = scalar_lea.vmem [#allocation2], %s259
          %s262 = ssub.s32 64, 64
          %263 = vsyncadd %s257, %s262
          %s264 = sadd.s32 %s26, %s25
          %s265 = smul.addr %s264, 64
          %s266 = scalar_lea.hbm %s0, %s265
          %s268 = sshll.u32 %s260, 4
          %s269 = int_to_ptr.vmem [resolvable:$true] %s268
          %271 = dma.hbm_to_vmem [thread:$0]  %s266, 64, %s269, %s257
        $region36: #{tpu_custom_call.1} parent=31 // pred_fallthru
          _
      $region32: #{tpu_custom_call.1} parent=5 // pred_fallthru
        _
      %p272 = scmp.le.s32.totalorder 1, %s18
      %p273 = scmp.lt.s32.totalorder %s18, 3
      %p274 = pnand %p272, %p273
      %p275 = pneg %p274
      // Predicated region
      $region37: #{tpu_custom_call.1} parent=5 // pred_check
        _
      $region38: #{tpu_custom_call.1} parent=5 // pred_check_branch
        %277 = sbr.rel (%p274) target = $region40
      $region39: #{tpu_custom_call.1} parent=5 // pred_region
        %s278 = ssub.s32 %s18, 1
        %s279 = sand.u32 %s45, 1
        %s280 = scalar_lea.sflag [#allocation3], %s279
        %s281 = sand.u32 %s45, 1
        %s282 = smul.addr %s281, 4
        %s283 = scalar_lea.vmem [#allocation2], %s282
        // Predicated region
        $region41: #{tpu_custom_call.1} parent=39 // pred_check
          %p284 = pneg %p58
        $region42: #{tpu_custom_call.1} parent=39 // pred_check_branch
          %286 = sbr.rel (%p284) target = $region44
        $region43: #{tpu_custom_call.1} parent=39 // pred_region
          %287 = dma.done %s280, 64
        $region44: #{tpu_custom_call.1} parent=39 // pred_fallthru
          _
        // Predicated region
        $region45: #{tpu_custom_call.1} parent=39 // pred_check
          %p288 = pneg %p84
        $region46: #{tpu_custom_call.1} parent=39 // pred_check_branch
          %290 = sbr.rel (%p288) target = $region48
        $region47: #{tpu_custom_call.1} parent=39 // pred_region
          %291 = dma.done [#allocation6], 1024
        $region48: #{tpu_custom_call.1} parent=39 // pred_fallthru
          _
        // Predicated region
        $region49: #{tpu_custom_call.1} parent=39 // pred_check
          %p292 = pneg %p136
        $region50: #{tpu_custom_call.1} parent=39 // pred_check_branch
          %294 = sbr.rel (%p292) target = $region52
        $region51: #{tpu_custom_call.1} parent=39 // pred_region
          %295 = dma.done [#allocation6], 1024
        $region52: #{tpu_custom_call.1} parent=39 // pred_fallthru
          _
        %s296 = sand.u32 %s45, 1
        %s297 = scalar_lea.sflag [#allocation3], %s296
        %s298 = sand.u32 %s45, 1
        %s299 = smul.addr %s298, 4
        %s300 = scalar_lea.vmem [#allocation2], %s299
        %p301 = pneg %p58
        %p302 = pneg %p55
        %p303 = pneg %p84
        %p304 = pneg %p81
        %p305 = scmp.lt.s32.totalorder %s27, 1
        %s306 = scalar_select %p305, %s27, 1
        %s307 = scalar_lea.vmem %s2, %s306
        %p308 = pneg %p110
        %p309 = pneg %p107
        %p310 = pneg %p136
        %p311 = pneg %p133
        %p312 = scmp.lt.s32.totalorder %s27, 1
        %s313 = scalar_select %p312, %s27, 1
        %s314 = scalar_lea.vmem %s4, %s313
        %p315 = pneg %p162
        %p316 = pneg %p159
        %p317 = pneg %p190
        %p318 = pneg %p187
        %s319 = sand.u32 %s177, 1
        %s320 = scalar_lea.sflag [#allocation4], %s319
        %s321 = sand.u32 %s177, 1
        %s322 = smul.addr %s321, 4
        %s323 = scalar_lea.vmem [#allocation8], %s322
        %p324 = scmp.lt.s32.totalorder %s27, 1
        %s325 = scalar_select %p324, %s27, 1
        %s326 = scalar_lea.vmem %s2, %s325
        %p327 = scmp.lt.s32.totalorder %s27, 1
        %s328 = scalar_select %p327, %s27, 1
        %s329 = scalar_lea.vmem %s4, %s328
        %v331 = vld [vmem:[%s283] sm:$0xf]
        %v332 = vld [vmem:[#allocation5] sm:$0xf]
        %v333 = vld [vmem:[#allocation5 + $0x4] sm:$0xf]
        %v334 = vld [vmem:[#allocation5 + $0x8] sm:$0xf]
        %v335 = vld [vmem:[#allocation5 + $0xc] sm:$0xf]
        %v336 = vld [vmem:[#allocation5 + $0x10] sm:$0xf]
        %v337 = vld [vmem:[#allocation5 + $0x14] sm:$0xf]
        %v338 = vld [vmem:[#allocation5 + $0x18] sm:$0xf]
        %v339 = vld [vmem:[#allocation5 + $0x1c] sm:$0xf]
        %v340 = vld [vmem:[#allocation5 + $0x20] sm:$0xf]
        %v341 = vld [vmem:[#allocation5 + $0x24] sm:$0xf]
        %v342 = vld [vmem:[#allocation5 + $0x28] sm:$0xf]
        %v343 = vld [vmem:[#allocation5 + $0x2c] sm:$0xf]
        %v344 = vld [vmem:[#allocation5 + $0x30] sm:$0xf]
        %v345 = vld [vmem:[#allocation5 + $0x34] sm:$0xf]
        %v346 = vld [vmem:[#allocation5 + $0x38] sm:$0xf]
        %v347 = vld [vmem:[#allocation5 + $0x3c] sm:$0xf]
        %v348 = vld [vmem:[%s326] sm:$0x1]
        %v350 = vlaneseq
        %v351 = vshrl.u32 %v350, 7
        %v352 = vsub.s32 0, %v351
        %v353 = vrot.slane %v348, %v352
        %v371 = vunpack.c.l.b16 %v332
        %v372 = vunpack.c.l.b16 %v333
        %v373 = vunpack.c.l.b16 %v334
        %v374 = vunpack.c.l.b16 %v335
        %v375 = vunpack.c.l.b16 %v336
        %v376 = vunpack.c.l.b16 %v337
        %v377 = vunpack.c.l.b16 %v338
        %v378 = vunpack.c.l.b16 %v339
        %v379 = vunpack.c.l.b16 %v340
        %v380 = vunpack.c.l.b16 %v341
        %v381 = vunpack.c.l.b16 %v342
        %v382 = vunpack.c.l.b16 %v343
        %v383 = vunpack.c.l.b16 %v344
        %v384 = vunpack.c.l.b16 %v345
        %v385 = vunpack.c.l.b16 %v346
        %v386 = vunpack.c.l.b16 %v347
        %v387 = vpack.c.b16 %v372, %v371
        %v388 = vpack.c.b16 %v374, %v373
        %v389 = vpack.c.b16 %v376, %v375
        %v390 = vpack.c.b16 %v378, %v377
        %v391 = vpack.c.b16 %v380, %v379
        %v392 = vpack.c.b16 %v382, %v381
        %v393 = vpack.c.b16 %v384, %v383
        %v394 = vpack.c.b16 %v386, %v385
        %403 = vmatprep.subr.bf16.mxu0 0
        %404 = vmatpush1.bf16.msra.mxu0 %v387
        %405 = vmatprep.subr.bf16.mxu0 0
        %406 = vmatpush1.bf16.msra.mxu0 %v388
        %407 = vmatprep.subr.bf16.mxu0 0
        %408 = vmatpush1.bf16.msra.mxu0 %v389
        %409 = vmatprep.subr.bf16.mxu0 0
        %410 = vmatpush1.bf16.msra.mxu0 %v390
        %411 = vmatprep.subr.bf16.mxu0 0
        %412 = vmatpush1.bf16.msra.mxu0 %v391
        %413 = vmatprep.subr.bf16.mxu0 0
        %414 = vmatpush1.bf16.msra.mxu0 %v392
        %415 = vmatprep.subr.bf16.mxu0 0
        %416 = vmatpush1.bf16.msra.mxu0 %v393
        %417 = vmatprep.subr.bf16.mxu0 0
        %418 = vmatpush1.bf16.msra.mxu0 %v394
        %419 = vmatprep.subr.bf16.mxu0 0
        %420 = vmatpush1.bf16.msra.mxu0 0
        %421 = vmatprep.subr.bf16.mxu0 0
        %422 = vmatpush1.bf16.msra.mxu0 0
        %423 = vmatprep.subr.bf16.mxu0 0
        %424 = vmatpush1.bf16.msra.mxu0 0
        %425 = vmatprep.subr.bf16.mxu0 0
        %426 = vmatpush1.bf16.msra.mxu0 0
        %427 = vmatprep.subr.bf16.mxu0 0
        %428 = vmatpush1.bf16.msra.mxu0 0
        %429 = vmatprep.subr.bf16.mxu0 0
        %430 = vmatpush1.bf16.msra.mxu0 0
        %431 = vmatprep.subr.bf16.mxu0 0
        %432 = vmatpush1.bf16.msra.mxu0 0
        %433 = vmatprep.subr.bf16.mxu0 0
        %434 = vmatpush1.bf16.msra.mxu0 0
        %435 = vmatprep.mubr.bf16.mxu0 0
        %436 = vmatmul.mubr.bf16.gmra.mrb[0].mxu0 %v331
        %v437 = vpop.f32.mrb[0].mxu0
        %v438 = vadd.f32 %v353, %v437
        %v439 = vpop.f32.mrb[0].mxu0
        %v440 = vpop.f32.mrb[0].mxu0
        %v441 = vpop.f32.mrb[0].mxu0
        %442 = vdwg.mxu0
        %v443 = vmax.f32 %v438, 0.0
        %v444 = vpack.c.bf16 %v443, %v443
        %v445 = vld [vmem:[#allocation7] sm:$0xf]
        %v446 = vld [vmem:[#allocation7 + $0x4] sm:$0xf]
        %v447 = vld [vmem:[#allocation7 + $0x8] sm:$0xf]
        %v448 = vld [vmem:[#allocation7 + $0xc] sm:$0xf]
        %v449 = vld [vmem:[#allocation7 + $0x10] sm:$0xf]
        %v450 = vld [vmem:[#allocation7 + $0x14] sm:$0xf]
        %v451 = vld [vmem:[#allocation7 + $0x18] sm:$0xf]
        %v452 = vld [vmem:[#allocation7 + $0x1c] sm:$0xf]
        %v453 = vld [vmem:[#allocation7 + $0x20] sm:$0xf]
        %v454 = vld [vmem:[#allocation7 + $0x24] sm:$0xf]
        %v455 = vld [vmem:[#allocation7 + $0x28] sm:$0xf]
        %v456 = vld [vmem:[#allocation7 + $0x2c] sm:$0xf]
        %v457 = vld [vmem:[#allocation7 + $0x30] sm:$0xf]
        %v458 = vld [vmem:[#allocation7 + $0x34] sm:$0xf]
        %v459 = vld [vmem:[#allocation7 + $0x38] sm:$0xf]
        %v460 = vld [vmem:[#allocation7 + $0x3c] sm:$0xf]
        %v461 = vld [vmem:[%s329] sm:$0x1]
        %v463 = vlaneseq
        %v464 = vshrl.u32 %v463, 7
        %v465 = vsub.s32 0, %v464
        %v466 = vrot.slane %v461, %v465
        %v484 = vunpack.c.l.b16 %v445
        %v485 = vunpack.c.l.b16 %v446
        %v486 = vunpack.c.l.b16 %v447
        %v487 = vunpack.c.l.b16 %v448
        %v488 = vunpack.c.l.b16 %v449
        %v489 = vunpack.c.l.b16 %v450
        %v490 = vunpack.c.l.b16 %v451
        %v491 = vunpack.c.l.b16 %v452
        %v492 = vunpack.c.l.b16 %v453
        %v493 = vunpack.c.l.b16 %v454
        %v494 = vunpack.c.l.b16 %v455
        %v495 = vunpack.c.l.b16 %v456
        %v496 = vunpack.c.l.b16 %v457
        %v497 = vunpack.c.l.b16 %v458
        %v498 = vunpack.c.l.b16 %v459
        %v499 = vunpack.c.l.b16 %v460
        %v500 = vpack.c.b16 %v485, %v484
        %v501 = vpack.c.b16 %v487, %v486
        %v502 = vpack.c.b16 %v489, %v488
        %v503 = vpack.c.b16 %v491, %v490
        %v504 = vpack.c.b16 %v493, %v492
        %v505 = vpack.c.b16 %v495, %v494
        %v506 = vpack.c.b16 %v497, %v496
        %v507 = vpack.c.b16 %v499, %v498
        %516 = vmatprep.subr.bf16.mxu0 0
        %517 = vmatpush1.bf16.msra.mxu0 %v500
        %518 = vmatprep.subr.bf16.mxu0 0
        %519 = vmatpush1.bf16.msra.mxu0 %v501
        %520 = vmatprep.subr.bf16.mxu0 0
        %521 = vmatpush1.bf16.msra.mxu0 %v502
        %522 = vmatprep.subr.bf16.mxu0 0
        %523 = vmatpush1.bf16.msra.mxu0 %v503
        %524 = vmatprep.subr.bf16.mxu0 0
        %525 = vmatpush1.bf16.msra.mxu0 %v504
        %526 = vmatprep.subr.bf16.mxu0 0
        %527 = vmatpush1.bf16.msra.mxu0 %v505
        %528 = vmatprep.subr.bf16.mxu0 0
        %529 = vmatpush1.bf16.msra.mxu0 %v506
        %530 = vmatprep.subr.bf16.mxu0 0
        %531 = vmatpush1.bf16.msra.mxu0 %v507
        %532 = vmatprep.subr.bf16.mxu0 0
        %533 = vmatpush1.bf16.msra.mxu0 0
        %534 = vmatprep.subr.bf16.mxu0 0
        %535 = vmatpush1.bf16.msra.mxu0 0
        %536 = vmatprep.subr.bf16.mxu0 0
        %537 = vmatpush1.bf16.msra.mxu0 0
        %538 = vmatprep.subr.bf16.mxu0 0
        %539 = vmatpush1.bf16.msra.mxu0 0
        %540 = vmatprep.subr.bf16.mxu0 0
        %541 = vmatpush1.bf16.msra.mxu0 0
        %542 = vmatprep.subr.bf16.mxu0 0
        %543 = vmatpush1.bf16.msra.mxu0 0
        %544 = vmatprep.subr.bf16.mxu0 0
        %545 = vmatpush1.bf16.msra.mxu0 0
        %546 = vmatprep.subr.bf16.mxu0 0
        %547 = vmatpush1.bf16.msra.mxu0 0
        %548 = vmatprep.mubr.bf16.mxu0 0
        %549 = vmatmul.mubr.bf16.gmra.mrb[0].mxu0 %v444
        %v550 = vpop.f32.mrb[0].mxu0
        %v551 = vadd.f32 %v466, %v550
        %v552 = vpop.f32.mrb[0].mxu0
        %v553 = vpop.f32.mrb[0].mxu0
        %v554 = vpop.f32.mrb[0].mxu0
        %555 = vdwg.mxu0
        %v556 = vpack.c.bf16 %v551, %v551
        %557 = vst [vmem:[%s323] sm:$0xf] %v556
        %s558 = sand.u32 %s177, 1
        %s559 = scalar_lea.sflag [#allocation4], %s558
        %s560 = sand.u32 %s177, 1
        %s561 = smul.addr %s560, 4
        %s562 = scalar_lea.vmem [#allocation8], %s561
        // Predicated region
        $region53: #{tpu_custom_call.1} parent=39 // pred_check
          %p563 = pneg %p187
        $region54: #{tpu_custom_call.1} parent=39 // pred_check_branch
          %565 = sbr.rel (%p563) target = $region56
        $region55: #{tpu_custom_call.1} parent=39 // pred_region
          %s567 = ssub.s32 64, 64
          %568 = vsyncadd %s559, %s567
          %s569 = sadd.s32 %s28, %s27
          %s570 = smul.addr %s569, 64
          %s571 = scalar_lea.hbm %s5, %s570
          %s573 = sshll.u32 %s562, 4
          %s574 = int_to_ptr.vmem [resolvable:$true] %s573
          %576 = dma.vmem_to_hbm [thread:$0]  %s574, 64, %s571, %s559
        $region56: #{tpu_custom_call.1} parent=39 // pred_fallthru
          _
      $region40: #{tpu_custom_call.1} parent=5 // pred_fallthru
        _
      %p577 = scmp.le.s32.totalorder 2, %s18
      // Predicated region
      $region57: #{tpu_custom_call.1} parent=5 // pred_check
        %p578 = pneg %p577
      $region58: #{tpu_custom_call.1} parent=5 // pred_check_branch
        %580 = sbr.rel (%p578) target = $region60
      $region59: #{tpu_custom_call.1} parent=5 // pred_region
        %s581 = ssub.s32 %s18, 2
        // Predicated region
        $region61: #{tpu_custom_call.1} parent=59 // pred_check
          %p582 = pneg %p193
        $region62: #{tpu_custom_call.1} parent=59 // pred_check_branch
          %584 = sbr.rel (%p582) target = $region64
        $region63: #{tpu_custom_call.1} parent=59 // pred_region
          %s585 = sand.u32 %s178, 1
          %s586 = scalar_lea.sflag [#allocation4], %s585
          %s587 = sand.u32 %s178, 1
          %s588 = smul.addr %s587, 4
          %s589 = scalar_lea.vmem [#allocation8], %s588
          %590 = dma.done %s586, 64
        $region64: #{tpu_custom_call.1} parent=59 // pred_fallthru
          _
      $region60: #{tpu_custom_call.1} parent=5 // pred_fallthru
        _
    $region6: #{tpu_custom_call.1} parent=1 // loop_footer
      %s22 = sadd.s32 1, %s18
    $region7: #{tpu_custom_call.1} parent=1 // loop_footer_branch
      %17 = sbr.rel target = $region3
    $region8: #{tpu_custom_call.1} parent=1 // loop_exit
      _
    %591 = vsyncpa [#allocation3], 1
    %s592 = scalar_lea.sflag [#allocation3], 1
    %593 = vsyncpa %s592, 1
    %594 = vsyncpa [#allocation6], 1
    %595 = vsyncpa [#allocation4], 1
    %s596 = scalar_lea.sflag [#allocation4], 1
    %597 = vsyncpa %s596, 1

</llo_original>
